<compile_context>
chip_gen: v6e
topology: v6e:2x2x1
jax: 0.10.0
libtpu: 0.0.40
codegen_flags: <defaults>
</compile_context>

<pallas_src>
import functools
import math

import jax
import jax.numpy as jnp
from jax.experimental import pallas as pl
from jax.experimental.pallas import tpu as pltpu

STATE_DIM = 3
ACTION_DIM = 4
HIDDEN = 64
LANES = 2 * HIDDEN              # fused actor|critic lane width = 128
ACTION_STD_INIT = 0.6

IN_W = ACTION_DIM + STATE_DIM + 1   # packed input cols: [action(4), state(3), 1]
OUT_W = 8                           # packed output cols: [logprob, value, pad..]

# bf16 weight buffer (WP_ROWS, 128): the two big 128x128 matmul weights.
R_W2 = 0                       # rows   0..127 : layer-2 block-diagonal weight
R_W3 = R_W2 + LANES            # rows 128..255 : layer-3 weight (mean cols 0..3, value col 4)
WP_ROWS = 2 * LANES            # 256, multiple of the bf16 (16,128) tile

# f32 consts buffer (CP_ROWS, 128): tiny layer-1 weight + biases + logprob consts.
RC_W1 = 0                      # rows 0..7 : layer-1 weight, bias folded into row 7 (ones col)
RC_B2 = RC_W1 + IN_W           # row 8     : layer-2 bias [ab2 | cb2]
RC_B3 = RC_B2 + 1              # row 9     : layer-3 bias [ab3(4), cb3, 0...]
RC_CONST = RC_B3 + 1           # row 10    : [inv_var(4), logprob_const, 0...]
CP_ROWS = 16                   # padded to a multiple of 8 sublanes

MAX_TB = 4096                  # (tb,8) blocks lane-pad to (tb,128) in VMEM; this cap keeps
                               # streamed buffers + temporaries comfortably under 32 MiB
MIN_SPLIT = 256                # only force >=2 grid steps (v7x megacore) once both halves
                               # are at least 128 rows


def _round_up(x, m):
    return (x + m - 1) // m * m


def _cdiv(a, b):
    return (a + b - 1) // b


def _choose_tile(batch, block_b):
    b8 = _round_up(max(batch, 1), 8)
    tb = min(_round_up(block_b, 8), b8, MAX_TB)
    # v7x has 2 TensorCores per chip; the "parallel" axis only helps with >=2 steps.
    if b8 >= MIN_SPLIT and _cdiv(b8, tb) < 2:
        tb = _round_up(_cdiv(b8, 2), 8)
    return tb


def _ac_kernel(x_ref, w_ref, c_ref, out_ref):
    x = x_ref[...]                                   # (TB, 8) f32: [action | state | 1]

    w1 = c_ref[RC_W1:RC_W1 + IN_W, :]                # (8, 128)  f32, layer-1 bias folded
    b2 = c_ref[RC_B2:RC_B2 + 1, :]                   # (1, 128)  f32
    b3 = c_ref[RC_B3:RC_B3 + 1, :]                   # (1, 128)  f32
    consts = c_ref[RC_CONST:RC_CONST + 1, :]         # (1, 128)  f32
    w2 = w_ref[R_W2:R_W2 + LANES, :]                 # (128,128) bf16 block-diagonal
    w3 = w_ref[R_W3:R_W3 + LANES, :]                 # (128,128) bf16

    # Fused actor|critic MLP on full 128-lane slabs.  Layers 2/3 (the bulk of
    # the MACs) run the bf16 MXU path with f32 accumulation; everything else f32.
    h1 = jnp.tanh(jnp.dot(x, w1, preferred_element_type=jnp.float32))
    h2 = jnp.tanh(jnp.dot(h1.astype(jnp.bfloat16), w2,
                          preferred_element_type=jnp.float32) + b2)
    z = jnp.dot(h2.astype(jnp.bfloat16), w3,
                preferred_element_type=jnp.float32) + b3           # (TB, 128)

    action_mean = jnp.tanh(z[:, :ACTION_DIM])                      # (TB, 4)
    value = z[:, ACTION_DIM:ACTION_DIM + 1]                        # (TB, 1)

    inv_var = consts[:, :ACTION_DIM]                               # (1, 4)
    lp_const = consts[:, ACTION_DIM:ACTION_DIM + 1]                # -0.5*(k*log2pi + logdet)

    diff = x[:, :ACTION_DIM] - action_mean                         # action sits in cols 0..3
    quad = jnp.sum(diff * diff * inv_var, axis=-1, keepdims=True)  # (TB, 1)
    logprob = lp_const - 0.5 * quad                                # (TB, 1)

    col = jax.lax.broadcasted_iota(jnp.int32, out_ref.shape, 1)
    out_ref[...] = jnp.where(col == 0, logprob,
                             jnp.where(col == 1, value, 0.0))


@functools.partial(jax.jit, static_argnames=("block_b",))
def actor_critic_evaluate(state, action, w_packed, c_packed, *, block_b=2048):
    """Returns (action_logprobs (B,), state_values (B,1)); entropy is batch-free."""
    B = state.shape[0]
    tb = _choose_tile(B, block_b)
    grid = (_cdiv(B, tb),)                           # ragged tail handled by Pallas

    ones = jnp.ones((B, 1), jnp.float32)
    x = jnp.concatenate(
        [action.astype(jnp.float32), state.astype(jnp.float32), ones], axis=-1)

    cost = pl.CostEstimate(
        flops=2 * B * LANES * (IN_W + 2 * LANES),
        transcendentals=B * (2 * LANES + ACTION_DIM),
        bytes_accessed=(B * IN_W + B * OUT_W) * 4
                       + WP_ROWS * LANES * 2 + CP_ROWS * LANES * 4)

    out = pl.pallas_call(
        _ac_kernel,
        out_shape=jax.ShapeDtypeStruct((B, OUT_W), jnp.float32),
        grid=grid,
        in_specs=[
            pl.BlockSpec((tb, IN_W), lambda i: (i, 0)),          # streamed batch tiles
            pl.BlockSpec((WP_ROWS, LANES), lambda i: (0, 0)),    # resident bf16 weights
            pl.BlockSpec((CP_ROWS, LANES), lambda i: (0, 0)),    # resident f32 consts
        ],
        out_specs=pl.BlockSpec((tb, OUT_W), lambda i: (i, 0)),
        compiler_params=pltpu.CompilerParams(
            dimension_semantics=("parallel",),                   # megacore split on v7x
            vmem_limit_bytes=32 * 1024 * 1024,                   # > v5e's 16 MiB default
        ),
        cost_estimate=cost,
    )(x, w_packed, c_packed)

    logprob = out[:, 0]
    value = out[:, 1:2]
    return logprob, value


def dist_entropy(action_var, batch):
    """Diagonal-MVN entropy is batch-independent; computed outside the kernel."""
    logdet = jnp.sum(jnp.log(action_var.astype(jnp.float32)))
    ent = 0.5 * (float(ACTION_DIM) * (1.0 + math.log(2.0 * math.pi)) + logdet)
    return jnp.full((batch,), ent, jnp.float32)


def pack_params(params, action_var):
    """Pack weights into a bf16 (256,128) buffer + an f32 (16,128) consts buffer."""
    (aw1, ab1, aw2, ab2, aw3, ab3, cw1, cb1, cw2, cb2, cw3, cb3) = params

    w = jnp.zeros((WP_ROWS, LANES), jnp.float32)
    # Layer 2: block-diagonal (actor lanes 0..63, critic lanes 64..127).
    w = w.at[R_W2:R_W2 + HIDDEN, 0:HIDDEN].set(aw2)
    w = w.at[R_W2 + HIDDEN:R_W2 + 2 * HIDDEN, HIDDEN:2 * HIDDEN].set(cw2)
    # Layer 3: actor head -> cols 0..3, critic head -> col 4.
    w = w.at[R_W3:R_W3 + HIDDEN, 0:ACTION_DIM].set(aw3)
    w = w.at[R_W3 + HIDDEN:R_W3 + 2 * HIDDEN, ACTION_DIM:ACTION_DIM + 1].set(cw3)
    w_packed = w.astype(jnp.bfloat16)

    c = jnp.zeros((CP_ROWS, LANES), jnp.float32)
    # Layer 1: input cols [action(4) | state(3) | 1]; action rows stay zero.
    s0 = RC_W1 + ACTION_DIM
    c = c.at[s0:s0 + STATE_DIM, 0:HIDDEN].set(aw1)
    c = c.at[s0:s0 + STATE_DIM, HIDDEN:2 * HIDDEN].set(cw1)
    c = c.at[RC_W1 + IN_W - 1, 0:HIDDEN].set(ab1.reshape(-1))        # bias via ones column
    c = c.at[RC_W1 + IN_W - 1, HIDDEN:2 * HIDDEN].set(cb1.reshape(-1))
    c = c.at[RC_B2, 0:HIDDEN].set(ab2.reshape(-1))
    c = c.at[RC_B2, HIDDEN:2 * HIDDEN].set(cb2.reshape(-1))
    c = c.at[RC_B3, 0:ACTION_DIM].set(ab3.reshape(-1))
    c = c.at[RC_B3, ACTION_DIM].set(cb3.reshape(-1)[0])

    # Constants hoisted out of the kernel: inv_var and -0.5*(k*log2pi + logdet).
    av = action_var.reshape(-1).astype(jnp.float32)
    lp_const = -0.5 * (float(ACTION_DIM) * math.log(2.0 * math.pi)
                       + jnp.sum(jnp.log(av)))
    c = c.at[RC_CONST, 0:ACTION_DIM].set(1.0 / av)
    c = c.at[RC_CONST, ACTION_DIM].set(lp_const)
    return w_packed, c


def _init_linear(key, fan_in, fan_out):
    """PyTorch-style uniform init; weight stored (in_features, out_features)."""
    kw, kb = jax.random.split(key)
    bound = 1.0 / math.sqrt(fan_in)
    w = jax.random.uniform(kw, (fan_in, fan_out), jnp.float32, -bound, bound)
    b = jax.random.uniform(kb, (1, fan_out), jnp.float32, -bound, bound)
    return w, b


def make_params(key):
    keys = jax.random.split(key, 6)
    aw1, ab1 = _init_linear(keys[0], STATE_DIM, HIDDEN)
    aw2, ab2 = _init_linear(keys[1], HIDDEN, HIDDEN)
    aw3, ab3 = _init_linear(keys[2], HIDDEN, ACTION_DIM)
    cw1, cb1 = _init_linear(keys[3], STATE_DIM, HIDDEN)
    cw2, cb2 = _init_linear(keys[4], HIDDEN, HIDDEN)
    cw3, cb3 = _init_linear(keys[5], HIDDEN, 1)
    return (aw1, ab1, aw2, ab2, aw3, ab3, cw1, cb1, cw2, cb2, cw3, cb3)


def reference_evaluate(state, action, action_var, params):
    (aw1, ab1, aw2, ab2, aw3, ab3, cw1, cb1, cw2, cb2, cw3, cb3) = params
    h = jnp.tanh(state @ aw1 + ab1)
    h = jnp.tanh(h @ aw2 + ab2)
    mean = jnp.tanh(h @ aw3 + ab3)
    c = jnp.tanh(state @ cw1 + cb1)
    c = jnp.tanh(c @ cw2 + cb2)
    value = c @ cw3 + cb3
    var = action_var.reshape(-1)
    diff = action - mean
    quad = jnp.sum(diff * diff / var, axis=-1)
    logdet = jnp.sum(jnp.log(var))
    k = float(ACTION_DIM)
    log2pi = math.log(2.0 * math.pi)
    logprob = -0.5 * (quad + k * log2pi + logdet)
    entropy = jnp.broadcast_to(0.5 * (k * (1.0 + log2pi) + logdet), logprob.shape)
    return logprob, value, entropy


if __name__ == "__main__":
    key = jax.random.PRNGKey(0)
    k_data, k_params = jax.random.split(key)

    params = make_params(k_params)
    action_var = jnp.full((ACTION_DIM,), ACTION_STD_INIT * ACTION_STD_INIT,
                          dtype=jnp.float32)
    w_packed, c_packed = pack_params(params, action_var)

    # (B, block_b): small single-tile case and a gridded case with a ragged tail
    # (300 is not a multiple of the 128-row tile nor of 8).
    for B, block_b in ((8, 512), (300, 128)):
        ks, ka = jax.random.split(jax.random.fold_in(k_data, B))
        state = jax.random.normal(ks, (B, STATE_DIM), jnp.float32)
        action = jax.random.uniform(ka, (B, ACTION_DIM), jnp.float32)

        logprob, value = actor_critic_evaluate(state, action, w_packed, c_packed,
                                               block_b=block_b)
        entropy = dist_entropy(action_var, B)
        jax.block_until_ready((logprob, value, entropy))

        ref_lp, ref_v, ref_e = reference_evaluate(state, action, action_var, params)
        assert logprob.shape == (B,) and value.shape == (B, 1) and entropy.shape == (B,)
        # bf16 weights in layers 2/3 -> tolerance loosened per the perf review.
        assert jnp.allclose(logprob, ref_lp, atol=2e-2, rtol=2e-2)
        assert jnp.allclose(value, ref_v, atol=2e-2, rtol=2e-2)
        assert jnp.allclose(entropy, ref_e, atol=1e-4, rtol=1e-4)

    print("KERNEL_OK")
</pallas_src>

<mosaic_0001>
module attributes {stable_mosaic.version = 11 : i64} {
  func.func @_ac_kernel(%arg0: i32, %arg1: memref<8x8xf32, #tpu.memory_space<vmem>>, %arg2: memref<256x128xbf16, #tpu.memory_space<vmem>>, %arg3: memref<16x128xf32, #tpu.memory_space<vmem>>, %arg4: memref<8x8xf32, #tpu.memory_space<vmem>>) attributes {dimension_semantics = [#tpu.dimension_semantics<parallel>], iteration_bounds = array<i64: 1>, scalar_prefetch = 0 : i64, scratch_operands = 0 : i64, tpu.core_type = #tpu.core_type<tc>, window_params = [{transform_indices = @transform_0, window_bounds = array<i64: 8, 8>}, {pipeline_mode = #tpu.pipeline_mode<synchronous>, transform_indices = @transform_1, window_bounds = array<i64: 256, 128>}, {pipeline_mode = #tpu.pipeline_mode<synchronous>, transform_indices = @transform_2, window_bounds = array<i64: 16, 128>}, {transform_indices = @transform_3, window_bounds = array<i64: 8, 8>}]} {
    %c0 = arith.constant 0 : index
    %c0_0 = arith.constant 0 : index
    %0 = vector.load %arg1[%c0, %c0_0] : memref<8x8xf32, #tpu.memory_space<vmem>>, vector<8x8xf32>
    %c0_1 = arith.constant 0 : index
    %c0_2 = arith.constant 0 : index
    %1 = vector.load %arg3[%c0_1, %c0_2] : memref<16x128xf32, #tpu.memory_space<vmem>>, vector<8x128xf32>
    %c8 = arith.constant 8 : index
    %c0_3 = arith.constant 0 : index
    %2 = vector.load %arg3[%c8, %c0_3] : memref<16x128xf32, #tpu.memory_space<vmem>>, vector<1x128xf32>
    %c9 = arith.constant 9 : index
    %c0_4 = arith.constant 0 : index
    %3 = vector.load %arg3[%c9, %c0_4] : memref<16x128xf32, #tpu.memory_space<vmem>>, vector<1x128xf32>
    %c10 = arith.constant 10 : index
    %c0_5 = arith.constant 0 : index
    %4 = vector.load %arg3[%c10, %c0_5] : memref<16x128xf32, #tpu.memory_space<vmem>>, vector<1x128xf32>
    %c0_6 = arith.constant 0 : index
    %c0_7 = arith.constant 0 : index
    %5 = vector.load %arg2[%c0_6, %c0_7] : memref<256x128xbf16, #tpu.memory_space<vmem>>, vector<128x128xbf16>
    %c128 = arith.constant 128 : index
    %c0_8 = arith.constant 0 : index
    %6 = vector.load %arg2[%c128, %c0_8] : memref<256x128xbf16, #tpu.memory_space<vmem>>, vector<128x128xbf16>
    %cst = arith.constant dense<0.000000e+00> : vector<8x128xf32>
    %7 = tpu.matmul %0, %1, %cst {dimension_numbers = #tpu.dot_dimension_numbers<[1], [0], [0], [1], [0, 0, 1, 1], [], []>} : vector<8x8xf32>, vector<8x128xf32>, vector<8x128xf32> -> vector<8x128xf32>
    %8 = math.tanh %7 : vector<8x128xf32>
    %9 = arith.truncf %8 : vector<8x128xf32> to vector<8x128xbf16>
    %cst_9 = arith.constant dense<0.000000e+00> : vector<8x128xf32>
    %10 = tpu.matmul %9, %5, %cst_9 {dimension_numbers = #tpu.dot_dimension_numbers<[1], [0], [0], [1], [0, 0, 1, 1], [], []>} : vector<8x128xbf16>, vector<128x128xbf16>, vector<8x128xf32> -> vector<8x128xf32>
    %11 = vector.broadcast %2 : vector<1x128xf32> to vector<8x128xf32>
    %12 = arith.addf %10, %11 : vector<8x128xf32>
    %13 = math.tanh %12 : vector<8x128xf32>
    %14 = arith.truncf %13 : vector<8x128xf32> to vector<8x128xbf16>
    %cst_10 = arith.constant dense<0.000000e+00> : vector<8x128xf32>
    %15 = tpu.matmul %14, %6, %cst_10 {dimension_numbers = #tpu.dot_dimension_numbers<[1], [0], [0], [1], [0, 0, 1, 1], [], []>} : vector<8x128xbf16>, vector<128x128xbf16>, vector<8x128xf32> -> vector<8x128xf32>
    %16 = vector.broadcast %3 : vector<1x128xf32> to vector<8x128xf32>
    %17 = arith.addf %15, %16 : vector<8x128xf32>
    %18 = vector.extract_strided_slice %17 {offsets = [0, 0], sizes = [8, 4], strides = [1, 1]} : vector<8x128xf32> to vector<8x4xf32>
    %19 = math.tanh %18 : vector<8x4xf32>
    %20 = vector.extract_strided_slice %17 {offsets = [0, 4], sizes = [8, 1], strides = [1, 1]} : vector<8x128xf32> to vector<8x1xf32>
    %21 = vector.extract_strided_slice %4 {offsets = [0, 0], sizes = [1, 4], strides = [1, 1]} : vector<1x128xf32> to vector<1x4xf32>
    %22 = vector.extract_strided_slice %4 {offsets = [0, 4], sizes = [1, 1], strides = [1, 1]} : vector<1x128xf32> to vector<1x1xf32>
    %23 = vector.extract_strided_slice %0 {offsets = [0, 0], sizes = [8, 4], strides = [1, 1]} : vector<8x8xf32> to vector<8x4xf32>
    %24 = arith.subf %23, %19 : vector<8x4xf32>
    %25 = arith.mulf %24, %24 : vector<8x4xf32>
    %26 = vector.broadcast %21 : vector<1x4xf32> to vector<8x4xf32>
    %27 = arith.mulf %25, %26 : vector<8x4xf32>
    %cst_11 = arith.constant dense<0.000000e+00> : vector<8xf32>
    %28 = vector.multi_reduction <add>, %27, %cst_11 [1] : vector<8x4xf32> to vector<8xf32>
    %29 = vector.shape_cast %28 : vector<8xf32> to vector<8x1xf32>
    %cst_12 = arith.constant 5.000000e-01 : f32
    %30 = vector.broadcast %cst_12 : f32 to vector<8x1xf32>
    %31 = arith.mulf %30, %29 : vector<8x1xf32>
    %32 = vector.broadcast %22 : vector<1x1xf32> to vector<8x1xf32>
    %33 = arith.subf %32, %31 : vector<8x1xf32>
    %34 = tpu.iota {dimensions = array<i32: 1>} : vector<8x8xi32>
    %c0_i32 = arith.constant 0 : i32
    %35 = vector.broadcast %c0_i32 : i32 to vector<8x8xi32>
    %36 = arith.cmpi eq, %34, %35 : vector<8x8xi32>
    %c1_i32 = arith.constant 1 : i32
    %37 = vector.broadcast %c1_i32 : i32 to vector<8x8xi32>
    %38 = arith.cmpi eq, %34, %37 : vector<8x8xi32>
    %cst_13 = arith.constant 0.000000e+00 : f32
    %39 = vector.shape_cast %20 : vector<8x1xf32> to vector<8x1xf32>
    %40 = vector.broadcast %39 : vector<8x1xf32> to vector<8x8xf32>
    %41 = vector.broadcast %cst_13 : f32 to vector<8x8xf32>
    %42 = arith.select %38, %40, %41 : vector<8x8xi1>, vector<8x8xf32>
    %43 = vector.shape_cast %33 : vector<8x1xf32> to vector<8x1xf32>
    %44 = vector.broadcast %43 : vector<8x1xf32> to vector<8x8xf32>
    %45 = arith.select %36, %44, %42 : vector<8x8xi1>, vector<8x8xf32>
    %c0_14 = arith.constant 0 : index
    %c0_15 = arith.constant 0 : index
    %46 = vector.load %arg4[%c0_14, %c0_15] : memref<8x8xf32, #tpu.memory_space<vmem>>, vector<8x8xf32>
    tpu.vector_store %arg4[%c0_14, %c0_15], %45 {strides = array<i32>} : memref<8x8xf32, #tpu.memory_space<vmem>>, vector<8x8xf32>,
    return
  }
  func.func @transform_0(%arg0: i32) -> (i32, i32) {
    %c0_i32 = arith.constant 0 : i32
    %c0_i32_0 = arith.constant 0 : i32
    return %arg0, %c0_i32 : i32, i32
  }
  func.func @transform_1(%arg0: i32) -> (i32, i32) {
    %c0_i32 = arith.constant 0 : i32
    %c0_i32_0 = arith.constant 0 : i32
    %c0_i32_1 = arith.constant 0 : i32
    return %c0_i32, %c0_i32_0 : i32, i32
  }
  func.func @transform_2(%arg0: i32) -> (i32, i32) {
    %c0_i32 = arith.constant 0 : i32
    %c0_i32_0 = arith.constant 0 : i32
    %c0_i32_1 = arith.constant 0 : i32
    return %c0_i32, %c0_i32_0 : i32, i32
  }
  func.func @transform_3(%arg0: i32) -> (i32, i32) {
    %c0_i32 = arith.constant 0 : i32
    %c0_i32_0 = arith.constant 0 : i32
    return %arg0, %c0_i32 : i32, i32
  }
}

</mosaic_0001>

<llo_original>
// kernel: actor_critic_evaluate.1
$region0: #{actor_critic_evaluate.1}
  #allocation0 [shape = 'u32[]', space=smem, size = 0x4, offset = 0x4, fixed_abs, tag = 'smem constant byte address 0x4 - core index']
  #allocation1 [shape = 'u32[144,128]{1,0:T(1,128)}', space=vmem, size = 0x12000, scoped, tag = 'internal scratch']
  %s0 = inlined_call_operand.vmem [shape: f32[8,8], index: 0, kind: input, shape index: {}]
  %s1 = inlined_call_operand.hbm [shape: bf16[256,128], index: 1, kind: input, shape index: {}]
  %s2 = inlined_call_operand.vmem [shape: f32[16,128], index: 2, kind: input, shape index: {}]
  %s3 = inlined_call_operand.vmem [shape: f32[8,8], index: 3, kind: output, shape index: {}]
  %s4 = sld [smem:[#allocation0]]
  $region26: #{actor_critic_evaluate.1} parent=0
    _
  %s6 = ssub.s32 1, %s4
  %s7 = scalar_select 0, %s6, %s4
  $region1: #{actor_critic_evaluate.1} parent=0
    #allocation2 [shape = 'u8[65536]{0}', space=vmem, size = 0x10000, scoped, tag = 'input window, operand 1, single buffered']
    #allocation3 [shape = 's32[1]{0}', space=sflag, size = 0x4, scoped, tag = 'scoped memory for actor_critic_evaluate.1']
    %8 = vsyncpa [#allocation3], 0
    // Predicated region
    $region2: #{actor_critic_evaluate.1} parent=1 // pred_check
      _
    $region3: #{actor_critic_evaluate.1} parent=1 // pred_check_branch
      %10 = sbr.rel (0) target = $region5
    $region4: #{actor_critic_evaluate.1} parent=1 // pred_region
      _
    $region5: #{actor_critic_evaluate.1} parent=1 // pred_fallthru
      _
    // Predicated region
    $region6: #{actor_critic_evaluate.1} parent=1 // pred_check
      _
    $region7: #{actor_critic_evaluate.1} parent=1 // pred_check_branch
      %12 = sbr.rel (0) target = $region9
    $region8: #{actor_critic_evaluate.1} parent=1 // pred_region
      %s14 = ssub.s32 2048, 2048
      %15 = vsyncadd [#allocation3], %s14
      %s16 = sshll.u32 [#allocation2], 4
      %s17 = int_to_ptr.vmem [resolvable:$true] %s16
      %22 = dma.hbm_to_vmem [thread:$0]  %s1, 2048, %s17, [#allocation3], 64, 64, 4
    $region9: #{actor_critic_evaluate.1} parent=1 // pred_fallthru
      _
    // Predicated region
    $region10: #{actor_critic_evaluate.1} parent=1 // pred_check
      _
    $region11: #{actor_critic_evaluate.1} parent=1 // pred_check_branch
      %24 = sbr.rel (0) target = $region13
    $region12: #{actor_critic_evaluate.1} parent=1 // pred_region
      _
    $region13: #{actor_critic_evaluate.1} parent=1 // pred_fallthru
      _
    // Predicated region
    $region14: #{actor_critic_evaluate.1} parent=1 // pred_check
      _
    $region15: #{actor_critic_evaluate.1} parent=1 // pred_check_branch
      %26 = sbr.rel (0) target = $region17
    $region16: #{actor_critic_evaluate.1} parent=1 // pred_region
      %27 = dma.done [#allocation3], 2048
    $region17: #{actor_critic_evaluate.1} parent=1 // pred_fallthru
      _
    %v29 = vld [vmem:[%s0] sm:$0xff]
    %v30 = vld [vmem:[%s2] sm:$0xff]
    %v31 = vld [vmem:[%s2 + $0x8] sm:$0x1]
    %v32 = vld [vmem:[%s2 + $0x9] sm:$0x1]
    %v33 = vld [vmem:[%s2 + $0xa] sm:$0x1]
    %v34 = vld [vmem:[#allocation2] sm:$0xf]
    %v35 = vld [vmem:[#allocation2 + $0x4] sm:$0xf]
    %v36 = vld [vmem:[#allocation2 + $0x8] sm:$0xf]
    %v37 = vld [vmem:[#allocation2 + $0xc] sm:$0xf]
    %v38 = vld [vmem:[#allocation2 + $0x10] sm:$0xf]
    %v39 = vld [vmem:[#allocation2 + $0x14] sm:$0xf]
    %v40 = vld [vmem:[#allocation2 + $0x18] sm:$0xf]
    %v41 = vld [vmem:[#allocation2 + $0x1c] sm:$0xf]
    %v42 = vld [vmem:[#allocation2 + $0x20] sm:$0xf]
    %v43 = vld [vmem:[#allocation2 + $0x24] sm:$0xf]
    %v44 = vld [vmem:[#allocation2 + $0x28] sm:$0xf]
    %v45 = vld [vmem:[#allocation2 + $0x2c] sm:$0xf]
    %v46 = vld [vmem:[#allocation2 + $0x30] sm:$0xf]
    %v47 = vld [vmem:[#allocation2 + $0x34] sm:$0xf]
    %v48 = vld [vmem:[#allocation2 + $0x38] sm:$0xf]
    %v49 = vld [vmem:[#allocation2 + $0x3c] sm:$0xf]
    %v50 = vld [vmem:[#allocation2 + $0x40] sm:$0xf]
    %v51 = vld [vmem:[#allocation2 + $0x44] sm:$0xf]
    %v52 = vld [vmem:[#allocation2 + $0x48] sm:$0xf]
    %v53 = vld [vmem:[#allocation2 + $0x4c] sm:$0xf]
    %v54 = vld [vmem:[#allocation2 + $0x50] sm:$0xf]
    %v55 = vld [vmem:[#allocation2 + $0x54] sm:$0xf]
    %v56 = vld [vmem:[#allocation2 + $0x58] sm:$0xf]
    %v57 = vld [vmem:[#allocation2 + $0x5c] sm:$0xf]
    %v58 = vld [vmem:[#allocation2 + $0x60] sm:$0xf]
    %v59 = vld [vmem:[#allocation2 + $0x64] sm:$0xf]
    %v60 = vld [vmem:[#allocation2 + $0x68] sm:$0xf]
    %v61 = vld [vmem:[#allocation2 + $0x6c] sm:$0xf]
    %v62 = vld [vmem:[#allocation2 + $0x70] sm:$0xf]
    %v63 = vld [vmem:[#allocation2 + $0x74] sm:$0xf]
    %v64 = vld [vmem:[#allocation2 + $0x78] sm:$0xf]
    %v65 = vld [vmem:[#allocation2 + $0x7c] sm:$0xf]
    %vm66 = vcmask 64512
    %v68 = vsel %vm66, %v29, 0
    %70 = vmatprep.subr.mxu0 0.0
    %71 = vmatpush1.msra.mxu0 0.0
    %72 = vmatprep.subr.mxu0 0.0
    %73 = vmatpush1.msra.mxu0 0.0
    %74 = vmatprep.subr.mxu0 0.0
    %75 = vmatpush1.msra.mxu0 0.0
    %76 = vmatprep.subr.mxu0 0.0
    %77 = vmatpush1.msra.mxu0 0.0
    %78 = vmatprep.subr.mxu0 0.0
    %79 = vmatpush1.msra.mxu0 0.0
    %80 = vmatprep.subr.mxu0 0.0
    %81 = vmatpush1.msra.mxu0 0.0
    %82 = vmatprep.subr.mxu0 0.0
    %83 = vmatpush1.msra.mxu0 0.0
    %84 = vmatprep.subr.mxu0 0.0
    %85 = vmatpush1.msra.mxu0 0.0
    %86 = vmatprep.subr.mxu0 0.0
    %87 = vmatpush1.msra.mxu0 0.0
    %88 = vmatprep.subr.mxu0 0.0
    %89 = vmatpush1.msra.mxu0 0.0
    %90 = vmatprep.subr.mxu0 0.0
    %91 = vmatpush1.msra.mxu0 0.0
    %92 = vmatprep.subr.mxu0 0.0
    %93 = vmatpush1.msra.mxu0 0.0
    %94 = vmatprep.subr.mxu0 0.0
    %95 = vmatpush1.msra.mxu0 0.0
    %96 = vmatprep.subr.mxu0 0.0
    %97 = vmatpush1.msra.mxu0 0.0
    %98 = vmatprep.subr.mxu0 0.0
    %99 = vmatpush1.msra.mxu0 0.0
    %100 = vmatprep.subr.mxu0 0.0
    %101 = vmatpush1.msra.mxu0 %v30
    %102 = vmatprep.subr.mxu0 0.0
    %103 = vmatpush2.msra.mxu0 0.0
    %104 = vmatprep.subr.mxu0 0.0
    %105 = vmatpush2.msra.mxu0 0.0
    %106 = vmatprep.subr.mxu0 0.0
    %107 = vmatpush2.msra.mxu0 0.0
    %108 = vmatprep.subr.mxu0 0.0
    %109 = vmatpush2.msra.mxu0 0.0
    %110 = vmatprep.subr.mxu0 0.0
    %111 = vmatpush2.msra.mxu0 0.0
    %112 = vmatprep.subr.mxu0 0.0
    %113 = vmatpush2.msra.mxu0 0.0
    %114 = vmatprep.subr.mxu0 0.0
    %115 = vmatpush2.msra.mxu0 0.0
    %116 = vmatprep.subr.mxu0 0.0
    %117 = vmatpush2.msra.mxu0 0.0
    %118 = vmatprep.subr.mxu0 0.0
    %119 = vmatpush2.msra.mxu0 0.0
    %120 = vmatprep.subr.mxu0 0.0
    %121 = vmatpush2.msra.mxu0 0.0
    %122 = vmatprep.subr.mxu0 0.0
    %123 = vmatpush2.msra.mxu0 0.0
    %124 = vmatprep.subr.mxu0 0.0
    %125 = vmatpush2.msra.mxu0 0.0
    %126 = vmatprep.subr.mxu0 0.0
    %127 = vmatpush2.msra.mxu0 0.0
    %128 = vmatprep.subr.mxu0 0.0
    %129 = vmatpush2.msra.mxu0 0.0
    %130 = vmatprep.subr.mxu0 0.0
    %131 = vmatpush2.msra.mxu0 0.0
    %132 = vmatprep.subr.mxu0 0.0
    %133 = vmatpush2.msra.mxu0 0.0
    %134 = vmatprep.mubr.f32.mxu0 0.0
    %135 = vmatmul.mubr.f32.gmra.mxu0 %v68
    %v136 = vpop.f32.mrf.mxu0
    %v137 = vadd.f32 0.0, %v136
    %v138 = vpop.f32.mrf.mxu0
    %139 = vdwg.mxu0
    %v140 = vtanh.pop %v137
    %v141 = vpack.c.bf16 %v140, %v140
    %v142 = vlaneseq
    %v143 = vshrl.u32 %v142, 7
    %v144 = vsub.s32 0, %v143
    %v145 = vrot.slane %v31, %v144
    %v162 = vunpack.c.l.b16 %v34
    %v163 = vunpack.c.l.b16 %v35
    %v164 = vunpack.c.l.b16 %v36
    %v165 = vunpack.c.l.b16 %v37
    %v166 = vunpack.c.l.b16 %v38
    %v167 = vunpack.c.l.b16 %v39
    %v168 = vunpack.c.l.b16 %v40
    %v169 = vunpack.c.l.b16 %v41
    %v170 = vunpack.c.l.b16 %v42
    %v171 = vunpack.c.l.b16 %v43
    %v172 = vunpack.c.l.b16 %v44
    %v173 = vunpack.c.l.b16 %v45
    %v174 = vunpack.c.l.b16 %v46
    %v175 = vunpack.c.l.b16 %v47
    %v176 = vunpack.c.l.b16 %v48
    %v177 = vunpack.c.l.b16 %v49
    %v178 = vpack.c.b16 %v163, %v162
    %v179 = vpack.c.b16 %v165, %v164
    %v180 = vpack.c.b16 %v167, %v166
    %v181 = vpack.c.b16 %v169, %v168
    %v182 = vpack.c.b16 %v171, %v170
    %v183 = vpack.c.b16 %v173, %v172
    %v184 = vpack.c.b16 %v175, %v174
    %v185 = vpack.c.b16 %v177, %v176
    %194 = vmatprep.subr.bf16.mxu0 0
    %195 = vmatpush1.bf16.msra.mxu0 %v185
    %196 = vmatprep.subr.bf16.mxu0 0
    %197 = vmatpush1.bf16.msra.mxu0 %v184
    %198 = vmatprep.subr.bf16.mxu0 0
    %199 = vmatpush1.bf16.msra.mxu0 %v183
    %200 = vmatprep.subr.bf16.mxu0 0
    %201 = vmatpush1.bf16.msra.mxu0 %v182
    %202 = vmatprep.subr.bf16.mxu0 0
    %203 = vmatpush1.bf16.msra.mxu0 %v181
    %204 = vmatprep.subr.bf16.mxu0 0
    %205 = vmatpush1.bf16.msra.mxu0 %v180
    %206 = vmatprep.subr.bf16.mxu0 0
    %207 = vmatpush1.bf16.msra.mxu0 %v179
    %208 = vmatprep.subr.bf16.mxu0 0
    %209 = vmatpush1.bf16.msra.mxu0 %v178
    %210 = vmatprep.subr.bf16.mxu0 0
    %211 = vmatpush2.bf16.msra.mxu0 0
    %212 = vmatprep.subr.bf16.mxu0 0
    %213 = vmatpush2.bf16.msra.mxu0 0
    %214 = vmatprep.subr.bf16.mxu0 0
    %215 = vmatpush2.bf16.msra.mxu0 0
    %216 = vmatprep.subr.bf16.mxu0 0
    %217 = vmatpush2.bf16.msra.mxu0 0
    %218 = vmatprep.subr.bf16.mxu0 0
    %219 = vmatpush2.bf16.msra.mxu0 0
    %220 = vmatprep.subr.bf16.mxu0 0
    %221 = vmatpush2.bf16.msra.mxu0 0
    %222 = vmatprep.subr.bf16.mxu0 0
    %223 = vmatpush2.bf16.msra.mxu0 0
    %224 = vmatprep.subr.bf16.mxu0 0
    %225 = vmatpush2.bf16.msra.mxu0 0
    %226 = vmatprep.mubr.bf16.mxu0 0
    %227 = vmatmul.mubr.bf16.gmra.mxu0 %v141
    %v228 = vpop.f32.mrf.mxu0
    %v229 = vadd.f32 %v145, %v228
    %v230 = vpop.f32.mrf.mxu0
    %v231 = vpop.f32.mrf.mxu0
    %v232 = vpop.f32.mrf.mxu0
    %233 = vdwg.mxu0
    %v234 = vtanh.pop %v229
    %v235 = vpack.c.bf16 %v234, %v234
    %v236 = vlaneseq
    %v237 = vshrl.u32 %v236, 7
    %v238 = vsub.s32 0, %v237
    %v239 = vrot.slane %v32, %v238
    %v256 = vunpack.c.l.b16 %v50
    %v257 = vunpack.c.l.b16 %v51
    %v258 = vunpack.c.l.b16 %v52
    %v259 = vunpack.c.l.b16 %v53
    %v260 = vunpack.c.l.b16 %v54
    %v261 = vunpack.c.l.b16 %v55
    %v262 = vunpack.c.l.b16 %v56
    %v263 = vunpack.c.l.b16 %v57
    %v264 = vunpack.c.l.b16 %v58
    %v265 = vunpack.c.l.b16 %v59
    %v266 = vunpack.c.l.b16 %v60
    %v267 = vunpack.c.l.b16 %v61
    %v268 = vunpack.c.l.b16 %v62
    %v269 = vunpack.c.l.b16 %v63
    %v270 = vunpack.c.l.b16 %v64
    %v271 = vunpack.c.l.b16 %v65
    %v272 = vpack.c.b16 %v257, %v256
    %v273 = vpack.c.b16 %v259, %v258
    %v274 = vpack.c.b16 %v261, %v260
    %v275 = vpack.c.b16 %v263, %v262
    %v276 = vpack.c.b16 %v265, %v264
    %v277 = vpack.c.b16 %v267, %v266
    %v278 = vpack.c.b16 %v269, %v268
    %v279 = vpack.c.b16 %v271, %v270
    %288 = vmatprep.subr.bf16.mxu0 0
    %289 = vmatpush1.bf16.msra.mxu0 %v279
    %290 = vmatprep.subr.bf16.mxu0 0
    %291 = vmatpush1.bf16.msra.mxu0 %v278
    %292 = vmatprep.subr.bf16.mxu0 0
    %293 = vmatpush1.bf16.msra.mxu0 %v277
    %294 = vmatprep.subr.bf16.mxu0 0
    %295 = vmatpush1.bf16.msra.mxu0 %v276
    %296 = vmatprep.subr.bf16.mxu0 0
    %297 = vmatpush1.bf16.msra.mxu0 %v275
    %298 = vmatprep.subr.bf16.mxu0 0
    %299 = vmatpush1.bf16.msra.mxu0 %v274
    %300 = vmatprep.subr.bf16.mxu0 0
    %301 = vmatpush1.bf16.msra.mxu0 %v273
    %302 = vmatprep.subr.bf16.mxu0 0
    %303 = vmatpush1.bf16.msra.mxu0 %v272
    %304 = vmatprep.subr.bf16.mxu0 0
    %305 = vmatpush2.bf16.msra.mxu0 0
    %306 = vmatprep.subr.bf16.mxu0 0
    %307 = vmatpush2.bf16.msra.mxu0 0
    %308 = vmatprep.subr.bf16.mxu0 0
    %309 = vmatpush2.bf16.msra.mxu0 0
    %310 = vmatprep.subr.bf16.mxu0 0
    %311 = vmatpush2.bf16.msra.mxu0 0
    %312 = vmatprep.subr.bf16.mxu0 0
    %313 = vmatpush2.bf16.msra.mxu0 0
    %314 = vmatprep.subr.bf16.mxu0 0
    %315 = vmatpush2.bf16.msra.mxu0 0
    %316 = vmatprep.subr.bf16.mxu0 0
    %317 = vmatpush2.bf16.msra.mxu0 0
    %318 = vmatprep.subr.bf16.mxu0 0
    %319 = vmatpush2.bf16.msra.mxu0 0
    %320 = vmatprep.mubr.bf16.mxu0 0
    %321 = vmatmul.mubr.bf16.gmra.mxu0 %v235
    %v322 = vpop.f32.mrf.mxu0
    %v323 = vadd.f32 %v239, %v322
    %v324 = vpop.f32.mrf.mxu0
    %v325 = vpop.f32.mrf.mxu0
    %v326 = vpop.f32.mrf.mxu0
    %327 = vdwg.mxu0
    %v328 = vtanh.pop %v323
    %v329 = vsub.f32 %v29, %v328
    %v330 = vmul.f32 %v329, %v329
    %v331 = vlaneseq
    %v332 = vshrl.u32 %v331, 7
    %v333 = vsub.s32 0, %v332
    %v334 = vrot.slane %v33, %v333
    %v335 = vmul.f32 %v330, %v334
    %vm336 = vcmask 31744
    %v337 = vsel %vm336, %v335, 0.0
    %338 = vadd.xlane.f32.xlu0 %v337
    %v339 = vpop.xlane.xlu0 %338
    %v340 = vmul.f32 %v339, 0.5
    %v341 = vsub.f32 %v334, %v340
    %v342 = vlaneseq
    %v343 = vand.u32 %v342, 127
    %vm344 = vcmp.eq.s32.totalorder %v343, 0
    %vm345 = vcmp.eq.s32.totalorder %v343, 1
    %347 = vset.pattern.permute.xlu0 4
    %348 = vperm.xlu0 %347, %v323
    %v349 = vpop.permute.xlu0 %348
    %v351 = vsel %vm345, %v349, 0.0
    %353 = vset.pattern.permute.xlu0 4
    %354 = vperm.xlu0 %353, %v341
    %v355 = vpop.permute.xlu0 %354
    %v357 = vsel %vm344, %v355, %v351
    %358 = vst.msk [vmem:[%s3] sm:$0xff] %vm66, %v357
    // Predicated region
    $region18: #{actor_critic_evaluate.1} parent=1 // pred_check
      _
    $region19: #{actor_critic_evaluate.1} parent=1 // pred_check_branch
      %360 = sbr.rel (0) target = $region21
    $region20: #{actor_critic_evaluate.1} parent=1 // pred_region
      _
    $region21: #{actor_critic_evaluate.1} parent=1 // pred_fallthru
      _
    // Predicated region
    $region22: #{actor_critic_evaluate.1} parent=1 // pred_check
      _
    $region23: #{actor_critic_evaluate.1} parent=1 // pred_check_branch
      %362 = sbr.rel (0) target = $region25
    $region24: #{actor_critic_evaluate.1} parent=1 // pred_region
      _
    $region25: #{actor_critic_evaluate.1} parent=1 // pred_fallthru
      _
    %363 = vsyncpa [#allocation3], 1

</llo_original>
